<compile_context>
chip_gen: v6e
topology: v6e:2x2x1
jax: 0.10.0
libtpu: 0.0.40
codegen_flags: <defaults>
</compile_context>

<pallas_src>
import functools

import jax
import jax.numpy as jnp
import numpy as np
from jax import lax
from jax.experimental import pallas as pl
from jax.experimental.pallas import tpu as pltpu


def _rmsnorm_kernel(x_ref, g_ref, o_ref, *, eps):
    """RMSNorm over the last dim for one (rows, E) tile."""
    x = x_ref[...].astype(jnp.float32)          # (TR, E)
    g = g_ref[...].astype(jnp.float32)          # (1, E), broadcast over rows
    ms = jnp.mean(x * x, axis=-1, keepdims=True)    # (TR, 1)  lane reduce -> XLU
    inv = lax.rsqrt(ms + jnp.float32(eps))          # EUP
    o_ref[...] = (x * inv * g).astype(o_ref.dtype)  # VPU + unmasked lane-dense store


def rmsnorm_forward(x, gamma, *, eps=1e-6, block_rows=512):
    """x: (..., E) float; gamma: (E,).  Returns RMSNorm(x) * gamma."""
    orig_shape = x.shape
    E = orig_shape[-1]
    N = int(np.prod(orig_shape[:-1]))

    x2 = x.reshape(N, E)            # lane-dense rows
    g2 = gamma.reshape(1, E)

    # Single block if everything fits (the common small-B case -> 1 grid step,
    # zero per-step pipeline overhead); otherwise tile rows in multiples of 8.
    tr = N if N <= block_rows else block_rows
    grid = (pl.cdiv(N, tr),)

    out = pl.pallas_call(
        functools.partial(_rmsnorm_kernel, eps=eps),
        out_shape=jax.ShapeDtypeStruct((N, E), x.dtype),
        grid_spec=pltpu.PrefetchScalarGridSpec(
            num_scalar_prefetch=0,
            grid=grid,
            in_specs=[
                pl.BlockSpec((tr, E), lambda i: (i, 0)),   # x rows
                pl.BlockSpec((1, E), lambda i: (0, 0)),    # gamma (resident)
            ],
            out_specs=pl.BlockSpec((tr, E), lambda i: (i, 0)),
        ),
        compiler_params=pltpu.CompilerParams(
            dimension_semantics=("parallel",)),   # rows independent -> v7x 2-TC shard
    )(x2, g2)
    return out.reshape(orig_shape)


def reference_forward(x, gamma, eps=1e-6):
    """Pure-JAX replica of RMSNorm (the Normalization module in eval/train)."""
    xf = x.astype(jnp.float32)
    ms = jnp.mean(jnp.square(xf), axis=-1, keepdims=True)
    return (xf * lax.rsqrt(ms + eps) * gamma.astype(jnp.float32)).astype(x.dtype)


if __name__ == "__main__":
    # Shapes consistent with the module: batch=2, seq(block_size)=8,
    # embeddings_dims=384 (the ModelArgs default; also lane-dense = 3*128).
    B, S, E = 2, 8, 384

    key = jax.random.PRNGKey(0)
    kx, kg = jax.random.split(key)
    x = jax.random.normal(kx, (B, S, E), jnp.float32)
    # RMSNorm weight is initialized to ones in the module; perturb slightly so
    # the gamma multiply path is actually exercised by the check.
    gamma = 1.0 + 0.1 * jax.random.normal(kg, (E,), jnp.float32)

    # TODO(synk): the repo's RMSNorm eps value is not shown in the snippet;
    # the standard 1e-6 is assumed here.
    out = jax.block_until_ready(rmsnorm_forward(x, gamma))
    ref = jax.block_until_ready(reference_forward(x, gamma))

    np.testing.assert_allclose(np.asarray(out), np.asarray(ref),
                               rtol=1e-5, atol=1e-5)
    print("KERNEL_OK")
</pallas_src>

<mosaic_0001>
module attributes {stable_mosaic.version = 11 : i64} {
  func.func @_rmsnorm_kernel(%arg0: i32, %arg1: memref<16x384xf32, #tpu.memory_space<vmem>>, %arg2: memref<1x384xf32, #tpu.memory_space<vmem>>, %arg3: memref<16x384xf32, #tpu.memory_space<vmem>>) attributes {dimension_semantics = [#tpu.dimension_semantics<parallel>], iteration_bounds = array<i64: 1>, scalar_prefetch = 0 : i64, scratch_operands = 0 : i64, tpu.core_type = #tpu.core_type<tc>, window_params = [{transform_indices = @transform_0, window_bounds = array<i64: 16, 384>}, {pipeline_mode = #tpu.pipeline_mode<synchronous>, transform_indices = @transform_1, window_bounds = array<i64: 1, 384>}, {transform_indices = @transform_2, window_bounds = array<i64: 16, 384>}]} {
    %c0 = arith.constant 0 : index
    %c0_0 = arith.constant 0 : index
    %0 = vector.load %arg1[%c0, %c0_0] : memref<16x384xf32, #tpu.memory_space<vmem>>, vector<16x384xf32>
    %c0_1 = arith.constant 0 : index
    %c0_2 = arith.constant 0 : index
    %1 = vector.load %arg2[%c0_1, %c0_2] : memref<1x384xf32, #tpu.memory_space<vmem>>, vector<1x384xf32>
    %2 = arith.mulf %0, %0 : vector<16x384xf32>
    %cst = arith.constant dense<0.000000e+00> : vector<16xf32>
    %3 = vector.multi_reduction <add>, %2, %cst [1] : vector<16x384xf32> to vector<16xf32>
    %4 = vector.shape_cast %3 : vector<16xf32> to vector<16x1xf32>
    %cst_3 = arith.constant 3.840000e+02 : f32
    %5 = vector.broadcast %cst_3 : f32 to vector<16x1xf32>
    %6 = arith.divf %4, %5 : vector<16x1xf32>
    %cst_4 = arith.constant 9.99999997E-7 : f32
    %7 = vector.broadcast %cst_4 : f32 to vector<16x1xf32>
    %8 = arith.addf %6, %7 : vector<16x1xf32>
    %9 = math.rsqrt %8 : vector<16x1xf32>
    %10 = vector.broadcast %9 : vector<16x1xf32> to vector<16x384xf32>
    %11 = arith.mulf %0, %10 : vector<16x384xf32>
    %12 = vector.broadcast %1 : vector<1x384xf32> to vector<16x384xf32>
    %13 = arith.mulf %11, %12 : vector<16x384xf32>
    %c0_5 = arith.constant 0 : index
    %c0_6 = arith.constant 0 : index
    %14 = vector.load %arg3[%c0_5, %c0_6] : memref<16x384xf32, #tpu.memory_space<vmem>>, vector<16x384xf32>
    tpu.vector_store %arg3[%c0_5, %c0_6], %13 {strides = array<i32>} : memref<16x384xf32, #tpu.memory_space<vmem>>, vector<16x384xf32>,
    return
  }
  func.func @transform_0(%arg0: i32) -> (i32, i32) {
    %c0_i32 = arith.constant 0 : i32
    %c0_i32_0 = arith.constant 0 : i32
    return %arg0, %c0_i32 : i32, i32
  }
  func.func @transform_1(%arg0: i32) -> (i32, i32) {
    %c0_i32 = arith.constant 0 : i32
    %c0_i32_0 = arith.constant 0 : i32
    %c0_i32_1 = arith.constant 0 : i32
    return %c0_i32, %c0_i32_0 : i32, i32
  }
  func.func @transform_2(%arg0: i32) -> (i32, i32) {
    %c0_i32 = arith.constant 0 : i32
    %c0_i32_0 = arith.constant 0 : i32
    return %arg0, %c0_i32 : i32, i32
  }
}

</mosaic_0001>

<llo_original>
// kernel: tpu_custom_call.1
$region0: #{tpu_custom_call.1}
  #allocation0 [shape = 'u32[]', space=smem, size = 0x4, offset = 0x4, fixed_abs, tag = 'smem constant byte address 0x4 - core index']
  #allocation1 [shape = 'u32[144,128]{1,0:T(1,128)}', space=vmem, size = 0x12000, scoped, tag = 'internal scratch']
  %s0 = inlined_call_operand.hbm [shape: f32[16,384], index: 0, kind: input, shape index: {}]
  %s1 = inlined_call_operand.hbm [shape: f32[1,384], index: 1, kind: input, shape index: {}]
  %s2 = inlined_call_operand.hbm [shape: f32[16,384], index: 2, kind: output, shape index: {}]
  %s3 = sld [smem:[#allocation0]]
  $region26: #{tpu_custom_call.1} parent=0
    _
  %s5 = ssub.s32 1, %s3
  %s6 = scalar_select 0, %s5, %s3
  $region1: #{tpu_custom_call.1} parent=0
    #allocation2 [shape = 'u8[24576]{0}', space=vmem, size = 0x6000, scoped, tag = 'input window, operand 0, single buffered']
    #allocation3 [shape = 's32[1]{0}', space=sflag, size = 0x4, scoped, tag = 'scoped memory for tpu_custom_call.1']
    #allocation4 [shape = 's32[1]{0}', space=sflag, size = 0x4, scoped, tag = 'scoped memory for tpu_custom_call.1']
    #allocation5 [shape = 'u8[1536]{0}', space=vmem, size = 0x800, scoped, tag = 'input window, operand 1, single buffered']
    #allocation6 [shape = 's32[1]{0}', space=sflag, size = 0x4, scoped, tag = 'scoped memory for tpu_custom_call.1']
    #allocation7 [shape = 'u8[24576]{0}', space=vmem, size = 0x6000, scoped, tag = 'output window, operand 0, single buffered']
    %7 = vsyncpa [#allocation3], 0
    %8 = vsyncpa [#allocation6], 0
    %9 = vsyncpa [#allocation4], 0
    // Predicated region
    $region2: #{tpu_custom_call.1} parent=1 // pred_check
      _
    $region3: #{tpu_custom_call.1} parent=1 // pred_check_branch
      %11 = sbr.rel (0) target = $region5
    $region4: #{tpu_custom_call.1} parent=1 // pred_region
      %s13 = ssub.s32 768, 768
      %14 = vsyncadd [#allocation3], %s13
      %s15 = sshll.u32 [#allocation2], 4
      %s16 = int_to_ptr.vmem [resolvable:$true] %s15
      %21 = dma.hbm_to_vmem [thread:$0]  %s0, 768, %s16, [#allocation3], 384, 384, 24
    $region5: #{tpu_custom_call.1} parent=1 // pred_fallthru
      _
    // Predicated region
    $region6: #{tpu_custom_call.1} parent=1 // pred_check
      _
    $region7: #{tpu_custom_call.1} parent=1 // pred_check_branch
      %23 = sbr.rel (0) target = $region9
    $region8: #{tpu_custom_call.1} parent=1 // pred_region
      %s25 = ssub.s32 48, 48
      %26 = vsyncadd [#allocation6], %s25
      %s28 = sshll.u32 [#allocation5], 4
      %s29 = int_to_ptr.vmem [resolvable:$true] %s28
      %31 = dma.hbm_to_vmem [thread:$0]  %s1, 48, %s29, [#allocation6]
    $region9: #{tpu_custom_call.1} parent=1 // pred_fallthru
      _
    // Predicated region
    $region10: #{tpu_custom_call.1} parent=1 // pred_check
      _
    $region11: #{tpu_custom_call.1} parent=1 // pred_check_branch
      %33 = sbr.rel (0) target = $region13
    $region12: #{tpu_custom_call.1} parent=1 // pred_region
      %34 = dma.done [#allocation3], 768
    $region13: #{tpu_custom_call.1} parent=1 // pred_fallthru
      _
    // Predicated region
    $region14: #{tpu_custom_call.1} parent=1 // pred_check
      _
    $region15: #{tpu_custom_call.1} parent=1 // pred_check_branch
      %36 = sbr.rel (0) target = $region17
    $region16: #{tpu_custom_call.1} parent=1 // pred_region
      %37 = dma.done [#allocation6], 48
    $region17: #{tpu_custom_call.1} parent=1 // pred_fallthru
      _
    %v38 = vld [vmem:[#allocation2] sm:$0xff]
    %v39 = vld [vmem:[#allocation2 + $0x8] sm:$0xff]
    %v40 = vld [vmem:[#allocation2 + $0x10] sm:$0xff]
    %v41 = vld [vmem:[#allocation2 + $0x18] sm:$0xff]
    %v42 = vld [vmem:[#allocation2 + $0x20] sm:$0xff]
    %v43 = vld [vmem:[#allocation2 + $0x28] sm:$0xff]
    %v44 = vld [vmem:[#allocation5] sm:$0x7]
    %v45 = vmul.f32 %v38, %v38
    %v46 = vmul.f32 %v39, %v39
    %v47 = vmul.f32 %v40, %v40
    %v48 = vmul.f32 %v41, %v41
    %v49 = vmul.f32 %v42, %v42
    %v50 = vmul.f32 %v43, %v43
    %v51 = vadd.f32 %v45, %v46
    %v52 = vadd.f32 %v51, %v47
    %53 = vadd.xlane.f32.xlu0 %v52
    %v54 = vpop.xlane.xlu0 %53
    %v55 = vadd.f32 %v48, %v49
    %v56 = vadd.f32 %v55, %v50
    %57 = vadd.xlane.f32.xlu0 %v56
    %v58 = vpop.xlane.xlu0 %57
    %v59 = vrcp.pop 384.0
    %v60 = vmul.f32 %v54, %v59
    %v61 = vmul.f32 %v58, %v59
    %v62 = vadd.f32 %v60, 1e-06
    %v63 = vadd.f32 %v61, 1e-06
    %v64 = vrsqrt.pop %v62
    %v65 = vrsqrt.pop %v63
    %v66 = vmul.f32 %v38, %v64
    %v67 = vmul.f32 %v39, %v64
    %v68 = vmul.f32 %v40, %v64
    %v69 = vmul.f32 %v41, %v65
    %v70 = vmul.f32 %v42, %v65
    %v71 = vmul.f32 %v43, %v65
    %v73 = vlaneseq
    %v74 = vshrl.u32 %v73, 7
    %v75 = vsub.s32 0, %v74
    %v76 = vrot.slane %v44, %v75
    %v77 = vlaneseq
    %v78 = vshrl.u32 %v77, 7
    %v79 = vsub.s32 1, %v78
    %v80 = vrot.slane %v44, %v79
    %v81 = vlaneseq
    %v82 = vshrl.u32 %v81, 7
    %v83 = vsub.s32 2, %v82
    %v84 = vrot.slane %v44, %v83
    %v88 = vmul.f32 %v66, %v76
    %v89 = vmul.f32 %v67, %v80
    %v90 = vmul.f32 %v68, %v84
    %v91 = vmul.f32 %v69, %v76
    %v92 = vmul.f32 %v70, %v80
    %v93 = vmul.f32 %v71, %v84
    %94 = vst [vmem:[#allocation7] sm:$0xff] %v88
    %95 = vst [vmem:[#allocation7 + $0x8] sm:$0xff] %v89
    %96 = vst [vmem:[#allocation7 + $0x10] sm:$0xff] %v90
    %97 = vst [vmem:[#allocation7 + $0x18] sm:$0xff] %v91
    %98 = vst [vmem:[#allocation7 + $0x20] sm:$0xff] %v92
    %99 = vst [vmem:[#allocation7 + $0x28] sm:$0xff] %v93
    // Predicated region
    $region18: #{tpu_custom_call.1} parent=1 // pred_check
      _
    $region19: #{tpu_custom_call.1} parent=1 // pred_check_branch
      %101 = sbr.rel (0) target = $region21
    $region20: #{tpu_custom_call.1} parent=1 // pred_region
      %s103 = ssub.s32 768, 768
      %104 = vsyncadd [#allocation4], %s103
      %s105 = sshll.u32 [#allocation7], 4
      %s106 = int_to_ptr.vmem [resolvable:$true] %s105
      %111 = dma.vmem_to_hbm [thread:$0]  %s106, 768, %s2, [#allocation4], 384, 384, 24
    $region21: #{tpu_custom_call.1} parent=1 // pred_fallthru
      _
    // Predicated region
    $region22: #{tpu_custom_call.1} parent=1 // pred_check
      _
    $region23: #{tpu_custom_call.1} parent=1 // pred_check_branch
      %113 = sbr.rel (0) target = $region25
    $region24: #{tpu_custom_call.1} parent=1 // pred_region
      %114 = dma.done [#allocation4], 768
    $region25: #{tpu_custom_call.1} parent=1 // pred_fallthru
      _
    %115 = vsyncpa [#allocation3], 1
    %116 = vsyncpa [#allocation6], 1
    %117 = vsyncpa [#allocation4], 1

</llo_original>
